<compile_context>
chip_gen: v5e
topology: v5e:2x2
jax: 0.10.0
libtpu: 0.0.40
codegen_flags: <defaults>
</compile_context>

<pallas_src>
import functools
import math

import jax
import jax.numpy as jnp
from jax import lax
from jax.experimental import pallas as pl
from jax.experimental.pallas import tpu as pltpu


def _conv_prelu_kernel(b_tile, Hin, Hout, KH, stride, pad,
                       x_ref, wt_ref, b_ref, a_ref, o_ref, xph_ref=None):
    """Fused Conv2d(+bias) + PReLU for one batch tile.

    x_ref   : (b_tile, Hin, Win*Cin)        lane-dense input slab (bf16)
    wt_ref  : (KH, Win*Cin, Wout*Cout)      Toeplitz-lowered weights (bf16, resident)
    b_ref   : (1, Wout*Cout)                bias tiled over W (f32, resident)
    a_ref   : (1,)                          PReLU slope (SMEM scalar, f32)
    o_ref   : (b_tile, Hout, Wout*Cout)     lane-dense output slab (f32)
    xph_ref : (b_tile, Hin+2*pad, Win*Cin)  f32 H-padded scratch (only if needed)
    """
    L = x_ref.shape[-1]            # Win * Cin
    WC = o_ref.shape[-1]           # Wout * Cout
    M = b_tile * Hout
    use_scratch = (pad > 0) or (stride > 1)

    if use_scratch:
        if pad > 0:
            # Zero ONLY the 2*pad halo rows; the interior is overwritten below.
            zrows = jnp.zeros((b_tile, pad, L), xph_ref.dtype)
            xph_ref[:, 0:pad, :] = zrows
            xph_ref[:, pad + Hin:pad + Hin + pad, :] = zrows
        xph_ref[:, pad:pad + Hin, :] = x_ref[...].astype(xph_ref.dtype)

    acc = jnp.zeros((M, WC), jnp.float32)
    for dy in range(KH):                       # KH row-shifted lane-dense matmuls
        if use_scratch:
            if stride == 1:
                rows = xph_ref[:, dy:dy + Hout, :]
            else:
                rows = xph_ref[:, pl.ds(dy, Hout, stride), :]
        else:                                  # pad == 0 and stride == 1
            rows = x_ref[:, dy:dy + Hout, :]
        # Merge (b, ho) -> M (free: minor dim untouched); bf16 operand for the MXU.
        rows = rows.reshape(M, L).astype(wt_ref.dtype)
        acc = acc + jnp.dot(rows, wt_ref[dy], preferred_element_type=jnp.float32)

    acc = acc + b_ref[...]                     # bias in f32 on the accumulator
    alpha = a_ref[0]
    y = jnp.where(acc >= 0, acc, alpha * acc)  # PReLU (single shared slope), f32
    o_ref[...] = y.reshape(b_tile, Hout, WC).astype(o_ref.dtype)


def _lowered_weights(w_oihw, *, stride, padding, win, dtype):
    """Toeplitz/'lowered' conv weights, shape (KH, Win*Cin, Wout*Cout).

    Column (wo*Cout + co), row (w*Cin + ci) holds w[dy, dx, ci, co] where
    w == wo*stride + dx - padding; taps landing outside [0, Win) are dropped,
    which implements the W-direction zero padding exactly.
    """
    Cout, Cin, KH, KW = w_oihw.shape
    wout = (win + 2 * padding - KW) // stride + 1
    w_hwio = jnp.transpose(w_oihw, (2, 3, 1, 0)).astype(jnp.float32)    # (KH,KW,Cin,Cout)
    wo = jnp.arange(wout)
    dx = jnp.arange(KW)
    src_w = wo[:, None] * stride + dx[None, :] - padding                # (Wout, KW)
    onehot = (src_w[..., None] == jnp.arange(win)).astype(jnp.float32)  # (Wout, KW, Win)
    wt = jnp.einsum("adw,kdio->kwiao", onehot, w_hwio)                  # (KH,Win,Cin,Wout,Cout)
    return wt.reshape(KH, win * Cin, wout * Cout).astype(dtype)


def conv_block_forward(x_nchw, params, *, stride, padding,
                       compute_dtype=jnp.bfloat16, batch_tile=None):
    """ConvBlock.forward: PReLU(Conv2d(x)).  Input/output in PyTorch NCHW."""
    w_oihw = params["weight"]
    bias = params["bias"]
    alpha = params["prelu_a"]

    N, Cin, Hin, Win = x_nchw.shape
    Cout, _, KH, KW = w_oihw.shape
    Hout = (Hin + 2 * padding - KH) // stride + 1
    Wout = (Win + 2 * padding - KW) // stride + 1
    L, WC = Win * Cin, Wout * Cout

    b_tile = N if batch_tile is None else batch_tile
    assert N % b_tile == 0, (N, b_tile)

    # NCHW -> lane-dense (N, Hin, Win*Cin) slab; bf16 halves the input DMA.
    x_slab = jnp.transpose(x_nchw.astype(compute_dtype), (0, 2, 3, 1)).reshape(N, Hin, L)
    wt = _lowered_weights(w_oihw, stride=stride, padding=padding, win=Win,
                          dtype=compute_dtype)
    # Bias tiled over W so it broadcasts straight onto the (wo, co) lane layout.
    b_lane = jnp.tile(jnp.asarray(bias, jnp.float32).reshape(Cout), Wout).reshape(1, WC)
    a = jnp.asarray(alpha, jnp.float32).reshape(1)

    kernel = functools.partial(_conv_prelu_kernel, b_tile, Hin, Hout, KH,
                               stride, padding)

    scratch_shapes = []
    if padding > 0 or stride > 1:
        scratch_shapes = [pltpu.VMEM((b_tile, Hin + 2 * padding, L), jnp.float32)]

    out = pl.pallas_call(
        kernel,
        out_shape=jax.ShapeDtypeStruct((N, Hout, WC), jnp.float32),
        grid=(N // b_tile,),
        in_specs=[
            pl.BlockSpec((b_tile, Hin, L), lambda n: (n, 0, 0)),
            pl.BlockSpec((KH, L, WC), lambda n: (0, 0, 0)),        # resident weights
            pl.BlockSpec((1, WC), lambda n: (0, 0)),               # resident bias
            pl.BlockSpec(memory_space=pltpu.MemorySpace.SMEM),     # PReLU alpha
        ],
        out_specs=pl.BlockSpec((b_tile, Hout, WC), lambda n: (n, 0, 0)),
        scratch_shapes=scratch_shapes,
        compiler_params=pltpu.CompilerParams(
            dimension_semantics=("parallel",),
            vmem_limit_bytes=32 * 1024 * 1024),
    )(x_slab, wt, b_lane, a)

    out = out.reshape(N, Hout, Wout, Cout)                  # free (contiguous) reshape
    return jnp.transpose(out, (0, 3, 1, 2)).astype(jnp.float32)   # NHWC -> NCHW


def init_params(key, c_in, c_out, kernel_size):
    """PyTorch-like Conv2d default init (kaiming_uniform a=sqrt(5)) + PReLU(0.25)."""
    kw, kb = jax.random.split(key)
    fan_in = c_in * kernel_size * kernel_size
    bound = 1.0 / math.sqrt(fan_in)
    w = jax.random.uniform(kw, (c_out, c_in, kernel_size, kernel_size),
                           jnp.float32, -bound, bound)               # OIHW
    b = jax.random.uniform(kb, (c_out,), jnp.float32, -bound, bound)
    return {"weight": w, "bias": b, "prelu_a": 0.25}


def _ref_forward(x_nchw, params, *, stride, padding, compute_dtype=jnp.bfloat16):
    """Pure-JAX reference (lax conv).  Quantizes x/w to the kernel's MXU operand
    dtype so both sides see identical inputs; accumulation stays f32."""
    xq = x_nchw.astype(compute_dtype).astype(jnp.float32)
    wq = params["weight"].astype(compute_dtype).astype(jnp.float32)
    x = jnp.transpose(xq, (0, 2, 3, 1))
    w = jnp.transpose(wq, (2, 3, 1, 0))                              # OIHW -> HWIO
    o = lax.conv_general_dilated(
        x, w, (stride, stride), ((padding, padding), (padding, padding)),
        dimension_numbers=("NHWC", "HWIO", "NHWC"),
        precision=lax.Precision.HIGHEST)
    o = o + params["bias"].astype(jnp.float32)
    a = jnp.float32(params["prelu_a"])
    o = jnp.where(o >= 0, o, a * o)
    return jnp.transpose(o, (0, 3, 1, 2))


if __name__ == "__main__":
    key = jax.random.PRNGKey(0)
    kx, kp = jax.random.split(key)

    N, C_IN, H, W = 2, 4, 16, 16
    C_OUT, K = 32, 3

    x = jax.random.normal(kx, (N, C_IN, H, W), jnp.float32)          # NCHW
    params = init_params(kp, C_IN, C_OUT, K)

    # ConvBlock(4, 32, kernel_size=3, stride=1, padding=1)
    y1 = jax.block_until_ready(conv_block_forward(x, params, stride=1, padding=1))
    assert y1.shape == (N, C_OUT, H, W), y1.shape
    r1 = _ref_forward(x, params, stride=1, padding=1)
    e1 = float(jnp.max(jnp.abs(y1 - r1)))
    assert jnp.allclose(y1, r1, atol=2e-3, rtol=2e-3), f"stride-1 max abs err {e1}"

    # ConvBlock(4, 32, kernel_size=3, stride=2, padding=1): H stride via a
    # (proven) strided sublane read, W stride folded into the lowered weights.
    y2 = jax.block_until_ready(conv_block_forward(x, params, stride=2, padding=1))
    assert y2.shape == (N, C_OUT, H // 2, W // 2), y2.shape
    r2 = _ref_forward(x, params, stride=2, padding=1)
    e2 = float(jnp.max(jnp.abs(y2 - r2)))
    assert jnp.allclose(y2, r2, atol=2e-3, rtol=2e-3), f"stride-2 max abs err {e2}"

    print("KERNEL_OK")
</pallas_src>

<mosaic_0001>
module attributes {stable_mosaic.version = 11 : i64} {
  func.func @_conv_prelu_kernel(%arg0: i32, %arg1: memref<2x16x64xbf16, #tpu.memory_space<vmem>>, %arg2: memref<3x64x512xbf16, #tpu.memory_space<vmem>>, %arg3: memref<1x512xf32, #tpu.memory_space<vmem>>, %arg4: memref<1xf32, #tpu.memory_space<smem>>, %arg5: memref<2x16x512xf32, #tpu.memory_space<vmem>>, %arg6: memref<2x18x64xf32, #tpu.memory_space<vmem>>) attributes {dimension_semantics = [#tpu.dimension_semantics<parallel>], iteration_bounds = array<i64: 1>, scalar_prefetch = 0 : i64, scratch_operands = 1 : i64, tpu.core_type = #tpu.core_type<tc>, window_params = [{transform_indices = @transform_0, window_bounds = array<i64: 2, 16, 64>}, {pipeline_mode = #tpu.pipeline_mode<synchronous>, transform_indices = @transform_1, window_bounds = array<i64: 3, 64, 512>}, {pipeline_mode = #tpu.pipeline_mode<synchronous>, transform_indices = @transform_2, window_bounds = array<i64: 1, 512>}, {transform_indices = @transform_3, window_bounds = array<i64: 1>}, {transform_indices = @transform_4, window_bounds = array<i64: 2, 16, 512>}]} {
    %cst = arith.constant 0.000000e+00 : f32
    %0 = vector.broadcast %cst : f32 to vector<2x1x64xf32>
    %c0 = arith.constant 0 : index
    %c0_0 = arith.constant 0 : index
    %c0_1 = arith.constant 0 : index
    %1 = vector.load %arg6[%c0, %c0_0, %c0_1] : memref<2x18x64xf32, #tpu.memory_space<vmem>>, vector<2x1x64xf32>
    tpu.vector_store %arg6[%c0, %c0_0, %c0_1], %0 {strides = array<i32>} : memref<2x18x64xf32, #tpu.memory_space<vmem>>, vector<2x1x64xf32>,
    %c0_2 = arith.constant 0 : index
    %c17 = arith.constant 17 : index
    %c0_3 = arith.constant 0 : index
    %2 = vector.load %arg6[%c0_2, %c17, %c0_3] : memref<2x18x64xf32, #tpu.memory_space<vmem>>, vector<2x1x64xf32>
    tpu.vector_store %arg6[%c0_2, %c17, %c0_3], %0 {strides = array<i32>} : memref<2x18x64xf32, #tpu.memory_space<vmem>>, vector<2x1x64xf32>,
    %c0_4 = arith.constant 0 : index
    %c0_5 = arith.constant 0 : index
    %c0_6 = arith.constant 0 : index
    %3 = vector.load %arg1[%c0_4, %c0_5, %c0_6] : memref<2x16x64xbf16, #tpu.memory_space<vmem>>, vector<2x16x64xbf16>
    %4 = arith.extf %3 : vector<2x16x64xbf16> to vector<2x16x64xf32>
    %c0_7 = arith.constant 0 : index
    %c1 = arith.constant 1 : index
    %c0_8 = arith.constant 0 : index
    %5 = vector.load %arg6[%c0_7, %c1, %c0_8] : memref<2x18x64xf32, #tpu.memory_space<vmem>>, vector<2x16x64xf32>
    tpu.vector_store %arg6[%c0_7, %c1, %c0_8], %4 {strides = array<i32>} : memref<2x18x64xf32, #tpu.memory_space<vmem>>, vector<2x16x64xf32>,
    %cst_9 = arith.constant 0.000000e+00 : f32
    %6 = vector.broadcast %cst_9 : f32 to vector<32x512xf32>
    %c0_10 = arith.constant 0 : index
    %c0_11 = arith.constant 0 : index
    %c0_12 = arith.constant 0 : index
    %7 = vector.load %arg6[%c0_10, %c0_11, %c0_12] : memref<2x18x64xf32, #tpu.memory_space<vmem>>, vector<2x16x64xf32>
    %8 = vector.shape_cast %7 : vector<2x16x64xf32> to vector<32x64xf32>
    %9 = arith.truncf %8 : vector<32x64xf32> to vector<32x64xbf16>
    %c0_13 = arith.constant 0 : index
    %c0_14 = arith.constant 0 : index
    %c0_15 = arith.constant 0 : index
    %10 = vector.load %arg2[%c0_13, %c0_14, %c0_15] : memref<3x64x512xbf16, #tpu.memory_space<vmem>>, vector<1x64x512xbf16>
    %11 = vector.shape_cast %10 : vector<1x64x512xbf16> to vector<64x512xbf16>
    %cst_16 = arith.constant dense<0.000000e+00> : vector<32x512xf32>
    %12 = tpu.matmul %9, %11, %cst_16 {dimension_numbers = #tpu.dot_dimension_numbers<[1], [0], [0], [1], [0, 0, 1, 1], [], []>} : vector<32x64xbf16>, vector<64x512xbf16>, vector<32x512xf32> -> vector<32x512xf32>
    %13 = arith.addf %6, %12 : vector<32x512xf32>
    %c0_17 = arith.constant 0 : index
    %c1_18 = arith.constant 1 : index
    %c0_19 = arith.constant 0 : index
    %14 = vector.load %arg6[%c0_17, %c1_18, %c0_19] : memref<2x18x64xf32, #tpu.memory_space<vmem>>, vector<2x16x64xf32>
    %15 = vector.shape_cast %14 : vector<2x16x64xf32> to vector<32x64xf32>
    %16 = arith.truncf %15 : vector<32x64xf32> to vector<32x64xbf16>
    %c1_20 = arith.constant 1 : index
    %c0_21 = arith.constant 0 : index
    %c0_22 = arith.constant 0 : index
    %17 = vector.load %arg2[%c1_20, %c0_21, %c0_22] : memref<3x64x512xbf16, #tpu.memory_space<vmem>>, vector<1x64x512xbf16>
    %18 = vector.shape_cast %17 : vector<1x64x512xbf16> to vector<64x512xbf16>
    %cst_23 = arith.constant dense<0.000000e+00> : vector<32x512xf32>
    %19 = tpu.matmul %16, %18, %cst_23 {dimension_numbers = #tpu.dot_dimension_numbers<[1], [0], [0], [1], [0, 0, 1, 1], [], []>} : vector<32x64xbf16>, vector<64x512xbf16>, vector<32x512xf32> -> vector<32x512xf32>
    %20 = arith.addf %13, %19 : vector<32x512xf32>
    %c0_24 = arith.constant 0 : index
    %c2 = arith.constant 2 : index
    %c0_25 = arith.constant 0 : index
    %21 = vector.load %arg6[%c0_24, %c2, %c0_25] : memref<2x18x64xf32, #tpu.memory_space<vmem>>, vector<2x16x64xf32>
    %22 = vector.shape_cast %21 : vector<2x16x64xf32> to vector<32x64xf32>
    %23 = arith.truncf %22 : vector<32x64xf32> to vector<32x64xbf16>
    %c2_26 = arith.constant 2 : index
    %c0_27 = arith.constant 0 : index
    %c0_28 = arith.constant 0 : index
    %24 = vector.load %arg2[%c2_26, %c0_27, %c0_28] : memref<3x64x512xbf16, #tpu.memory_space<vmem>>, vector<1x64x512xbf16>
    %25 = vector.shape_cast %24 : vector<1x64x512xbf16> to vector<64x512xbf16>
    %cst_29 = arith.constant dense<0.000000e+00> : vector<32x512xf32>
    %26 = tpu.matmul %23, %25, %cst_29 {dimension_numbers = #tpu.dot_dimension_numbers<[1], [0], [0], [1], [0, 0, 1, 1], [], []>} : vector<32x64xbf16>, vector<64x512xbf16>, vector<32x512xf32> -> vector<32x512xf32>
    %27 = arith.addf %20, %26 : vector<32x512xf32>
    %c0_30 = arith.constant 0 : index
    %c0_31 = arith.constant 0 : index
    %28 = vector.load %arg3[%c0_30, %c0_31] : memref<1x512xf32, #tpu.memory_space<vmem>>, vector<1x512xf32>
    %29 = vector.broadcast %28 : vector<1x512xf32> to vector<32x512xf32>
    %30 = arith.addf %27, %29 : vector<32x512xf32>
    %c0_32 = arith.constant 0 : index
    %31 = memref.load %arg4[%c0_32] : memref<1xf32, #tpu.memory_space<smem>>
    %cst_33 = arith.constant 0.000000e+00 : f32
    %32 = vector.broadcast %cst_33 : f32 to vector<32x512xf32>
    %33 = arith.cmpf oge, %30, %32 : vector<32x512xf32>
    %34 = vector.broadcast %31 : f32 to vector<32x512xf32>
    %35 = arith.mulf %34, %30 : vector<32x512xf32>
    %36 = arith.select %33, %30, %35 : vector<32x512xi1>, vector<32x512xf32>
    %37 = vector.shape_cast %36 : vector<32x512xf32> to vector<2x16x512xf32>
    %c0_34 = arith.constant 0 : index
    %c0_35 = arith.constant 0 : index
    %c0_36 = arith.constant 0 : index
    %38 = vector.load %arg5[%c0_34, %c0_35, %c0_36] : memref<2x16x512xf32, #tpu.memory_space<vmem>>, vector<2x16x512xf32>
    tpu.vector_store %arg5[%c0_34, %c0_35, %c0_36], %37 {strides = array<i32>} : memref<2x16x512xf32, #tpu.memory_space<vmem>>, vector<2x16x512xf32>,
    return
  }
  func.func @transform_0(%arg0: i32) -> (i32, i32, i32) {
    %c0_i32 = arith.constant 0 : i32
    %c0_i32_0 = arith.constant 0 : i32
    %c0_i32_1 = arith.constant 0 : i32
    return %arg0, %c0_i32, %c0_i32_0 : i32, i32, i32
  }
  func.func @transform_1(%arg0: i32) -> (i32, i32, i32) {
    %c0_i32 = arith.constant 0 : i32
    %c0_i32_0 = arith.constant 0 : i32
    %c0_i32_1 = arith.constant 0 : i32
    %c0_i32_2 = arith.constant 0 : i32
    return %c0_i32, %c0_i32_0, %c0_i32_1 : i32, i32, i32
  }
  func.func @transform_2(%arg0: i32) -> (i32, i32) {
    %c0_i32 = arith.constant 0 : i32
    %c0_i32_0 = arith.constant 0 : i32
    %c0_i32_1 = arith.constant 0 : i32
    return %c0_i32, %c0_i32_0 : i32, i32
  }
  func.func @transform_3(%arg0: i32) -> i32 {
    %c0_i32 = arith.constant 0 : i32
    %c0_i32_0 = arith.constant 0 : i32
    return %c0_i32 : i32
  }
  func.func @transform_4(%arg0: i32) -> (i32, i32, i32) {
    %c0_i32 = arith.constant 0 : i32
    %c0_i32_0 = arith.constant 0 : i32
    %c0_i32_1 = arith.constant 0 : i32
    return %arg0, %c0_i32, %c0_i32_0 : i32, i32, i32
  }
}

</mosaic_0001>

<llo_original>
// kernel: tpu_custom_call.1
$region0: #{tpu_custom_call.1}
  #allocation0 [shape = 'u32[]', space=smem, size = 0x4, offset = 0x4, fixed_abs, tag = 'smem constant byte address 0x4 - core index']
  #allocation1 [shape = 'u32[72,128]{1,0:T(1,128)}', space=vmem, size = 0x9000, scoped, tag = 'internal scratch']
  #allocation2 [shape = 'f32[2,18,64]{2,1,0:T(8,128)}', space=vmem, size = 0x6000, scoped, tag = 'scratch operand']
  #allocation3 [shape = 'f32[1]{0:T(128)S(6)}', space=smem, size = 0x200, scoped, tag = 'scoped memory for tpu_custom_call.1']
  %s0 = inlined_call_operand.hbm [shape: bf16[2,16,64], index: 0, kind: input, shape index: {}]
  %s1 = inlined_call_operand.hbm [shape: bf16[3,64,512], index: 1, kind: input, shape index: {}]
  %s2 = inlined_call_operand.hbm [shape: f32[1,512], index: 2, kind: input, shape index: {}]
  %s3 = inlined_call_operand.<no memory space> [shape: f32[1], index: 3, kind: input, shape index: {}]
  %s4 = inlined_call_operand.hbm [shape: f32[2,16,512], index: 4, kind: output, shape index: {}]
  %s5 = sld [smem:[#allocation0]]
  $region38: #{tpu_custom_call.1} parent=0
    _
  %s7 = ssub.s32 1, %s5
  %s8 = scalar_select 0, %s7, %s5
  %9 = sst [smem:[#allocation3]] %s3
  $region1: #{tpu_custom_call.1} parent=0
    #allocation4 [shape = 'u8[8192]{0}', space=vmem, size = 0x2000, scoped, tag = 'input window, operand 0, single buffered']
    #allocation5 [shape = 's32[1]{0}', space=sflag, size = 0x4, scoped, tag = 'scoped memory for tpu_custom_call.1']
    #allocation6 [shape = 's32[1]{0}', space=sflag, size = 0x4, scoped, tag = 'scoped memory for tpu_custom_call.1']
    #allocation7 [shape = 'u8[196608]{0}', space=vmem, size = 0x30000, scoped, tag = 'input window, operand 1, single buffered']
    #allocation8 [shape = 's32[1]{0}', space=sflag, size = 0x4, scoped, tag = 'scoped memory for tpu_custom_call.1']
    #allocation9 [shape = 'u8[2048]{0}', space=vmem, size = 0x800, scoped, tag = 'input window, operand 2, single buffered']
    #allocation10 [shape = 'u8[65536]{0}', space=vmem, size = 0x10000, scoped, tag = 'output window, operand 0, single buffered']
    %10 = vsyncpa [#allocation5], 0
    %11 = vsyncpa [#allocation8], 0
    %12 = vsyncpa [#allocation6], 0
    // Predicated region
    $region2: #{tpu_custom_call.1} parent=1 // pred_check
      _
    $region3: #{tpu_custom_call.1} parent=1 // pred_check_branch
      %14 = sbr.rel (0) target = $region5
    $region4: #{tpu_custom_call.1} parent=1 // pred_region
      %16 = vsyncadd [#allocation5], 0
      %s17 = sshll.u32 %s0, 4
      %s18 = int_to_ptr.hbm [resolvable:$true] %s17
      %s19 = sshll.u32 [#allocation4], 4
      %s20 = int_to_ptr.vmem [resolvable:$true] %s19
      %25 = dma.hbm_to_vmem [thread:$0]  %s18, 256, %s20, [#allocation5], 64, 64, 4
    $region5: #{tpu_custom_call.1} parent=1 // pred_fallthru
      _
    // Predicated region
    $region6: #{tpu_custom_call.1} parent=1 // pred_check
      _
    $region7: #{tpu_custom_call.1} parent=1 // pred_check_branch
      %27 = sbr.rel (0) target = $region9
    $region8: #{tpu_custom_call.1} parent=1 // pred_region
      %29 = vsyncadd [#allocation8], 0
      %s30 = sshll.u32 %s1, 4
      %s31 = int_to_ptr.hbm [resolvable:$true] %s30
      %s32 = sshll.u32 [#allocation7], 4
      %s33 = int_to_ptr.vmem [resolvable:$true] %s32
      %38 = dma.hbm_to_vmem [thread:$0]  %s31, 6144, %s33, [#allocation8], 256, 256, 16
    $region9: #{tpu_custom_call.1} parent=1 // pred_fallthru
      _
    // Predicated region
    $region10: #{tpu_custom_call.1} parent=1 // pred_check
      _
    $region11: #{tpu_custom_call.1} parent=1 // pred_check_branch
      %40 = sbr.rel (0) target = $region13
    $region12: #{tpu_custom_call.1} parent=1 // pred_region
      %42 = vsyncadd [#allocation8], 0
      %s44 = sshll.u32 %s2, 4
      %s45 = int_to_ptr.hbm [resolvable:$true] %s44
      %s46 = sshll.u32 [#allocation9], 4
      %s47 = int_to_ptr.vmem [resolvable:$true] %s46
      %49 = dma.hbm_to_vmem [thread:$0]  %s45, 64, %s47, [#allocation8]
    $region13: #{tpu_custom_call.1} parent=1 // pred_fallthru
      _
    // Predicated region
    $region14: #{tpu_custom_call.1} parent=1 // pred_check
      _
    $region15: #{tpu_custom_call.1} parent=1 // pred_check_branch
      %51 = sbr.rel (0) target = $region17
    $region16: #{tpu_custom_call.1} parent=1 // pred_region
      _
    $region17: #{tpu_custom_call.1} parent=1 // pred_fallthru
      _
    // Predicated region
    $region18: #{tpu_custom_call.1} parent=1 // pred_check
      _
    $region19: #{tpu_custom_call.1} parent=1 // pred_check_branch
      %53 = sbr.rel (0) target = $region21
    $region20: #{tpu_custom_call.1} parent=1 // pred_region
      %55 = dma.done [#allocation5], 256
    $region21: #{tpu_custom_call.1} parent=1 // pred_fallthru
      _
    // Predicated region
    $region22: #{tpu_custom_call.1} parent=1 // pred_check
      _
    $region23: #{tpu_custom_call.1} parent=1 // pred_check_branch
      %57 = sbr.rel (0) target = $region25
    $region24: #{tpu_custom_call.1} parent=1 // pred_region
      %59 = dma.done [#allocation8], 6144
    $region25: #{tpu_custom_call.1} parent=1 // pred_fallthru
      _
    // Predicated region
    $region26: #{tpu_custom_call.1} parent=1 // pred_check
      _
    $region27: #{tpu_custom_call.1} parent=1 // pred_check_branch
      %61 = sbr.rel (0) target = $region29
    $region28: #{tpu_custom_call.1} parent=1 // pred_region
      %63 = dma.done [#allocation8], 64
    $region29: #{tpu_custom_call.1} parent=1 // pred_fallthru
      _
    %vm65 = vcmask 516096
    %66 = vst.msk [vmem:[#allocation2] sm:$0x1] %vm65, 0.0
    %67 = vst.msk [vmem:[#allocation2 + $0x18] sm:$0x1] %vm65, 0.0
    %68 = vst.msk [vmem:[#allocation2 + $0x11] sm:$0x1] %vm65, 0.0
    %69 = vst.msk [vmem:[#allocation2 + $0x29] sm:$0x1] %vm65, 0.0
    %v70 = vld [vmem:[#allocation4] sm:$0xf]
    %v71 = vld [vmem:[#allocation4 + $0x4] sm:$0xf]
    %v72 = vld [vmem:[#allocation4 + $0x8] sm:$0xf]
    %v73 = vld [vmem:[#allocation4 + $0xc] sm:$0xf]
    %v74 = vunpack.c.l.bf16 %v70
    %v75 = vunpack.c.l.bf16 %v71
    %v76 = vunpack.c.l.bf16 %v72
    %v77 = vunpack.c.l.bf16 %v73
    %vm78 = vcmask 523264
    %79 = vst.msk [vmem:[#allocation2 + $0x1] sm:$0xff] %vm78, %v74
    %80 = vst.msk [vmem:[#allocation2 + $0x9] sm:$0xff] %vm78, %v75
    %81 = vst.msk [vmem:[#allocation2 + $0x19] sm:$0xff] %vm78, %v76
    %82 = vst.msk [vmem:[#allocation2 + $0x21] sm:$0xff] %vm78, %v77
    %v83 = vld [vmem:[#allocation2] sm:$0xff]
    %v84 = vld [vmem:[#allocation2 + $0x8] sm:$0xff]
    %v85 = vld [vmem:[#allocation2 + $0x18] sm:$0xff]
    %v86 = vld [vmem:[#allocation2 + $0x20] sm:$0xff]
    %v87 = vpack.c.bf16 %v84, %v83
    %v88 = vpack.c.bf16 %v86, %v85
    %v89 = vld [vmem:[#allocation7] sm:$0xff]
    %v90 = vld [vmem:[#allocation7 + $0x8] sm:$0xff]
    %v91 = vld [vmem:[#allocation7 + $0x10] sm:$0xff]
    %v92 = vld [vmem:[#allocation7 + $0x18] sm:$0xff]
    %v93 = vld [vmem:[#allocation7 + $0x20] sm:$0xff]
    %v94 = vld [vmem:[#allocation7 + $0x28] sm:$0xff]
    %v95 = vld [vmem:[#allocation7 + $0x30] sm:$0xff]
    %v96 = vld [vmem:[#allocation7 + $0x38] sm:$0xff]
    %v97 = vld [vmem:[#allocation7 + $0x40] sm:$0xff]
    %v98 = vld [vmem:[#allocation7 + $0x48] sm:$0xff]
    %v99 = vld [vmem:[#allocation7 + $0x50] sm:$0xff]
    %v100 = vld [vmem:[#allocation7 + $0x58] sm:$0xff]
    %v101 = vld [vmem:[#allocation7 + $0x60] sm:$0xff]
    %v102 = vld [vmem:[#allocation7 + $0x68] sm:$0xff]
    %v103 = vld [vmem:[#allocation7 + $0x70] sm:$0xff]
    %v104 = vld [vmem:[#allocation7 + $0x78] sm:$0xff]
    %v105 = vld [vmem:[#allocation2 + $0x1] sm:$0xff]
    %v106 = vld [vmem:[#allocation2 + $0x9] sm:$0xff]
    %v107 = vld [vmem:[#allocation2 + $0x19] sm:$0xff]
    %v108 = vld [vmem:[#allocation2 + $0x21] sm:$0xff]
    %v109 = vpack.c.bf16 %v106, %v105
    %v110 = vpack.c.bf16 %v108, %v107
    %s111 = scalar_lea.vmem [#allocation7], 128
    %v112 = vld [vmem:[%s111] sm:$0xff]
    %v113 = vld [vmem:[%s111 + $0x8] sm:$0xff]
    %v114 = vld [vmem:[%s111 + $0x10] sm:$0xff]
    %v115 = vld [vmem:[%s111 + $0x18] sm:$0xff]
    %v116 = vld [vmem:[%s111 + $0x20] sm:$0xff]
    %v117 = vld [vmem:[%s111 + $0x28] sm:$0xff]
    %v118 = vld [vmem:[%s111 + $0x30] sm:$0xff]
    %v119 = vld [vmem:[%s111 + $0x38] sm:$0xff]
    %v120 = vld [vmem:[%s111 + $0x40] sm:$0xff]
    %v121 = vld [vmem:[%s111 + $0x48] sm:$0xff]
    %v122 = vld [vmem:[%s111 + $0x50] sm:$0xff]
    %v123 = vld [vmem:[%s111 + $0x58] sm:$0xff]
    %v124 = vld [vmem:[%s111 + $0x60] sm:$0xff]
    %v125 = vld [vmem:[%s111 + $0x68] sm:$0xff]
    %v126 = vld [vmem:[%s111 + $0x70] sm:$0xff]
    %v127 = vld [vmem:[%s111 + $0x78] sm:$0xff]
    %v144 = vunpack.c.l.b16 %v112
    %v145 = vunpack.c.h.b16 %v112
    %v146 = vunpack.c.l.b16 %v113
    %v147 = vunpack.c.h.b16 %v113
    %v148 = vunpack.c.l.b16 %v114
    %v149 = vunpack.c.h.b16 %v114
    %v150 = vunpack.c.l.b16 %v115
    %v151 = vunpack.c.h.b16 %v115
    %v152 = vunpack.c.l.b16 %v116
    %v153 = vunpack.c.h.b16 %v116
    %v154 = vunpack.c.l.b16 %v117
    %v155 = vunpack.c.h.b16 %v117
    %v156 = vunpack.c.l.b16 %v118
    %v157 = vunpack.c.h.b16 %v118
    %v158 = vunpack.c.l.b16 %v119
    %v159 = vunpack.c.h.b16 %v119
    %v160 = vunpack.c.l.b16 %v120
    %v161 = vunpack.c.h.b16 %v120
    %v162 = vunpack.c.l.b16 %v121
    %v163 = vunpack.c.h.b16 %v121
    %v164 = vunpack.c.l.b16 %v122
    %v165 = vunpack.c.h.b16 %v122
    %v166 = vunpack.c.l.b16 %v123
    %v167 = vunpack.c.h.b16 %v123
    %v168 = vunpack.c.l.b16 %v124
    %v169 = vunpack.c.h.b16 %v124
    %v170 = vunpack.c.l.b16 %v125
    %v171 = vunpack.c.h.b16 %v125
    %v172 = vunpack.c.l.b16 %v126
    %v173 = vunpack.c.h.b16 %v126
    %v174 = vunpack.c.l.b16 %v127
    %v175 = vunpack.c.h.b16 %v127
    %v176 = vpack.c.b16 %v148, %v144
    %v177 = vpack.c.b16 %v149, %v145
    %v178 = vpack.c.b16 %v150, %v146
    %v179 = vpack.c.b16 %v151, %v147
    %v180 = vpack.c.b16 %v156, %v152
    %v181 = vpack.c.b16 %v157, %v153
    %v182 = vpack.c.b16 %v158, %v154
    %v183 = vpack.c.b16 %v159, %v155
    %v184 = vpack.c.b16 %v164, %v160
    %v185 = vpack.c.b16 %v165, %v161
    %v186 = vpack.c.b16 %v166, %v162
    %v187 = vpack.c.b16 %v167, %v163
    %v188 = vpack.c.b16 %v172, %v168
    %v189 = vpack.c.b16 %v173, %v169
    %v190 = vpack.c.b16 %v174, %v170
    %v191 = vpack.c.b16 %v175, %v171
    %v209 = vsel %vm78, %v109, 0
    %v212 = vsel %vm78, %v110, 0
    %214 = vmatpush.bf16.msra.mxu0 0
    %215 = vmatpush.bf16.msra.mxu0 0
    %216 = vmatpush.bf16.msra.mxu0 0
    %217 = vmatpush.bf16.msra.mxu0 0
    %218 = vmatpush.bf16.msra.mxu0 %v188
    %219 = vmatpush.bf16.msra.mxu0 %v184
    %220 = vmatpush.bf16.msra.mxu0 %v180
    %221 = vmatpush.bf16.msra.mxu0 %v176
    %222 = vmatmul.bf16.gmra.mxu0 %v209
    %v223 = vpop.f32.mrf.mxu0
    %v224 = vadd.f32 0.0, %v223
    %v225 = vpop.f32.mrf.mxu0
    %v226 = vadd.f32 0.0, %v225
    %227 = vmatmul.bf16.gmra.mxu0 %v212
    %v228 = vpop.f32.mrf.mxu0
    %v229 = vadd.f32 0.0, %v228
    %v230 = vpop.f32.mrf.mxu0
    %v231 = vadd.f32 0.0, %v230
    %232 = vdwg.mxu0
    %233 = vmatpush.bf16.msra.mxu0 0
    %234 = vmatpush.bf16.msra.mxu0 0
    %235 = vmatpush.bf16.msra.mxu0 0
    %236 = vmatpush.bf16.msra.mxu0 0
    %237 = vmatpush.bf16.msra.mxu0 %v189
    %238 = vmatpush.bf16.msra.mxu0 %v185
    %239 = vmatpush.bf16.msra.mxu0 %v181
    %240 = vmatpush.bf16.msra.mxu0 %v177
    %241 = vmatmul.bf16.gmra.mxu0 %v209
    %v242 = vpop.f32.mrf.mxu0
    %v243 = vadd.f32 0.0, %v242
    %v244 = vpop.f32.mrf.mxu0
    %v245 = vadd.f32 0.0, %v244
    %246 = vmatmul.bf16.gmra.mxu0 %v212
    %v247 = vpop.f32.mrf.mxu0
    %v248 = vadd.f32 0.0, %v247
    %v249 = vpop.f32.mrf.mxu0
    %v250 = vadd.f32 0.0, %v249
    %251 = vdwg.mxu0
    %252 = vmatpush.bf16.msra.mxu0 0
    %253 = vmatpush.bf16.msra.mxu0 0
    %254 = vmatpush.bf16.msra.mxu0 0
    %255 = vmatpush.bf16.msra.mxu0 0
    %256 = vmatpush.bf16.msra.mxu0 %v190
    %257 = vmatpush.bf16.msra.mxu0 %v186
    %258 = vmatpush.bf16.msra.mxu0 %v182
    %259 = vmatpush.bf16.msra.mxu0 %v178
    %260 = vmatmul.bf16.gmra.mxu0 %v209
    %v261 = vpop.f32.mrf.mxu0
    %v262 = vadd.f32 0.0, %v261
    %v263 = vpop.f32.mrf.mxu0
    %v264 = vadd.f32 0.0, %v263
    %265 = vmatmul.bf16.gmra.mxu0 %v212
    %v266 = vpop.f32.mrf.mxu0
    %v267 = vadd.f32 0.0, %v266
    %v268 = vpop.f32.mrf.mxu0
    %v269 = vadd.f32 0.0, %v268
    %270 = vdwg.mxu0
    %271 = vmatpush.bf16.msra.mxu0 0
    %272 = vmatpush.bf16.msra.mxu0 0
    %273 = vmatpush.bf16.msra.mxu0 0
    %274 = vmatpush.bf16.msra.mxu0 0
    %275 = vmatpush.bf16.msra.mxu0 %v191
    %276 = vmatpush.bf16.msra.mxu0 %v187
    %277 = vmatpush.bf16.msra.mxu0 %v183
    %278 = vmatpush.bf16.msra.mxu0 %v179
    %279 = vmatmul.bf16.gmra.mxu0 %v209
    %v280 = vpop.f32.mrf.mxu0
    %v281 = vadd.f32 0.0, %v280
    %v282 = vpop.f32.mrf.mxu0
    %v283 = vadd.f32 0.0, %v282
    %284 = vmatmul.bf16.gmra.mxu0 %v212
    %v285 = vpop.f32.mrf.mxu0
    %v286 = vadd.f32 0.0, %v285
    %v287 = vpop.f32.mrf.mxu0
    %v288 = vadd.f32 0.0, %v287
    %289 = vdwg.mxu0
    %v306 = vunpack.c.l.b16 %v89
    %v307 = vunpack.c.h.b16 %v89
    %v308 = vunpack.c.l.b16 %v90
    %v309 = vunpack.c.h.b16 %v90
    %v310 = vunpack.c.l.b16 %v91
    %v311 = vunpack.c.h.b16 %v91
    %v312 = vunpack.c.l.b16 %v92
    %v313 = vunpack.c.h.b16 %v92
    %v314 = vunpack.c.l.b16 %v93
    %v315 = vunpack.c.h.b16 %v93
    %v316 = vunpack.c.l.b16 %v94
    %v317 = vunpack.c.h.b16 %v94
    %v318 = vunpack.c.l.b16 %v95
    %v319 = vunpack.c.h.b16 %v95
    %v320 = vunpack.c.l.b16 %v96
    %v321 = vunpack.c.h.b16 %v96
    %v322 = vunpack.c.l.b16 %v97
    %v323 = vunpack.c.h.b16 %v97
    %v324 = vunpack.c.l.b16 %v98
    %v325 = vunpack.c.h.b16 %v98
    %v326 = vunpack.c.l.b16 %v99
    %v327 = vunpack.c.h.b16 %v99
    %v328 = vunpack.c.l.b16 %v100
    %v329 = vunpack.c.h.b16 %v100
    %v330 = vunpack.c.l.b16 %v101
    %v331 = vunpack.c.h.b16 %v101
    %v332 = vunpack.c.l.b16 %v102
    %v333 = vunpack.c.h.b16 %v102
    %v334 = vunpack.c.l.b16 %v103
    %v335 = vunpack.c.h.b16 %v103
    %v336 = vunpack.c.l.b16 %v104
    %v337 = vunpack.c.h.b16 %v104
    %v338 = vpack.c.b16 %v310, %v306
    %v339 = vpack.c.b16 %v311, %v307
    %v340 = vpack.c.b16 %v312, %v308
    %v341 = vpack.c.b16 %v313, %v309
    %v342 = vpack.c.b16 %v318, %v314
    %v343 = vpack.c.b16 %v319, %v315
    %v344 = vpack.c.b16 %v320, %v316
    %v345 = vpack.c.b16 %v321, %v317
    %v346 = vpack.c.b16 %v326, %v322
    %v347 = vpack.c.b16 %v327, %v323
    %v348 = vpack.c.b16 %v328, %v324
    %v349 = vpack.c.b16 %v329, %v325
    %v350 = vpack.c.b16 %v334, %v330
    %v351 = vpack.c.b16 %v335, %v331
    %v352 = vpack.c.b16 %v336, %v332
    %v353 = vpack.c.b16 %v337, %v333
    %v371 = vsel %vm78, %v87, 0
    %v374 = vsel %vm78, %v88, 0
    %376 = vmatpush.bf16.msra.mxu0 0
    %377 = vmatpush.bf16.msra.mxu0 0
    %378 = vmatpush.bf16.msra.mxu0 0
    %379 = vmatpush.bf16.msra.mxu0 0
    %380 = vmatpush.bf16.msra.mxu0 %v350
    %381 = vmatpush.bf16.msra.mxu0 %v346
    %382 = vmatpush.bf16.msra.mxu0 %v342
    %383 = vmatpush.bf16.msra.mxu0 %v338
    %384 = vmatmul.bf16.gmra.mxu0 %v371
    %v385 = vpop.f32.mrf.mxu0
    %v386 = vadd.f32 %v224, %v385
    %v387 = vpop.f32.mrf.mxu0
    %v388 = vadd.f32 %v226, %v387
    %389 = vmatmul.bf16.gmra.mxu0 %v374
    %v390 = vpop.f32.mrf.mxu0
    %v391 = vadd.f32 %v229, %v390
    %v392 = vpop.f32.mrf.mxu0
    %v393 = vadd.f32 %v231, %v392
    %394 = vdwg.mxu0
    %395 = vmatpush.bf16.msra.mxu0 0
    %396 = vmatpush.bf16.msra.mxu0 0
    %397 = vmatpush.bf16.msra.mxu0 0
    %398 = vmatpush.bf16.msra.mxu0 0
    %399 = vmatpush.bf16.msra.mxu0 %v351
    %400 = vmatpush.bf16.msra.mxu0 %v347
    %401 = vmatpush.bf16.msra.mxu0 %v343
    %402 = vmatpush.bf16.msra.mxu0 %v339
    %403 = vmatmul.bf16.gmra.mxu0 %v371
    %v404 = vpop.f32.mrf.mxu0
    %v405 = vadd.f32 %v243, %v404
    %v406 = vpop.f32.mrf.mxu0
    %v407 = vadd.f32 %v245, %v406
    %408 = vmatmul.bf16.gmra.mxu0 %v374
    %v409 = vpop.f32.mrf.mxu0
    %v410 = vadd.f32 %v248, %v409
    %v411 = vpop.f32.mrf.mxu0
    %v412 = vadd.f32 %v250, %v411
    %413 = vdwg.mxu0
    %414 = vmatpush.bf16.msra.mxu0 0
    %415 = vmatpush.bf16.msra.mxu0 0
    %416 = vmatpush.bf16.msra.mxu0 0
    %417 = vmatpush.bf16.msra.mxu0 0
    %418 = vmatpush.bf16.msra.mxu0 %v352
    %419 = vmatpush.bf16.msra.mxu0 %v348
    %420 = vmatpush.bf16.msra.mxu0 %v344
    %421 = vmatpush.bf16.msra.mxu0 %v340
    %422 = vmatmul.bf16.gmra.mxu0 %v371
    %v423 = vpop.f32.mrf.mxu0
    %v424 = vadd.f32 %v262, %v423
    %v425 = vpop.f32.mrf.mxu0
    %v426 = vadd.f32 %v264, %v425
    %427 = vmatmul.bf16.gmra.mxu0 %v374
    %v428 = vpop.f32.mrf.mxu0
    %v429 = vadd.f32 %v267, %v428
    %v430 = vpop.f32.mrf.mxu0
    %v431 = vadd.f32 %v269, %v430
    %432 = vdwg.mxu0
    %433 = vmatpush.bf16.msra.mxu0 0
    %434 = vmatpush.bf16.msra.mxu0 0
    %435 = vmatpush.bf16.msra.mxu0 0
    %436 = vmatpush.bf16.msra.mxu0 0
    %437 = vmatpush.bf16.msra.mxu0 %v353
    %438 = vmatpush.bf16.msra.mxu0 %v349
    %439 = vmatpush.bf16.msra.mxu0 %v345
    %440 = vmatpush.bf16.msra.mxu0 %v341
    %441 = vmatmul.bf16.gmra.mxu0 %v371
    %v442 = vpop.f32.mrf.mxu0
    %v443 = vadd.f32 %v281, %v442
    %v444 = vpop.f32.mrf.mxu0
    %v445 = vadd.f32 %v283, %v444
    %446 = vmatmul.bf16.gmra.mxu0 %v374
    %v447 = vpop.f32.mrf.mxu0
    %v448 = vadd.f32 %v286, %v447
    %v449 = vpop.f32.mrf.mxu0
    %v450 = vadd.f32 %v288, %v449
    %451 = vdwg.mxu0
    %v452 = vld [vmem:[#allocation2 + $0x2] sm:$0xff]
    %v453 = vld [vmem:[#allocation2 + $0xa] sm:$0xff]
    %v454 = vld [vmem:[#allocation2 + $0x1a] sm:$0xff]
    %v455 = vld [vmem:[#allocation2 + $0x22] sm:$0xff]
    %v456 = vpack.c.bf16 %v453, %v452
    %v457 = vpack.c.bf16 %v455, %v454
    %s458 = scalar_lea.vmem [#allocation7], 256
    %v459 = vld [vmem:[%s458] sm:$0xff]
    %v460 = vld [vmem:[%s458 + $0x8] sm:$0xff]
    %v461 = vld [vmem:[%s458 + $0x10] sm:$0xff]
    %v462 = vld [vmem:[%s458 + $0x18] sm:$0xff]
    %v463 = vld [vmem:[%s458 + $0x20] sm:$0xff]
    %v464 = vld [vmem:[%s458 + $0x28] sm:$0xff]
    %v465 = vld [vmem:[%s458 + $0x30] sm:$0xff]
    %v466 = vld [vmem:[%s458 + $0x38] sm:$0xff]
    %v467 = vld [vmem:[%s458 + $0x40] sm:$0xff]
    %v468 = vld [vmem:[%s458 + $0x48] sm:$0xff]
    %v469 = vld [vmem:[%s458 + $0x50] sm:$0xff]
    %v470 = vld [vmem:[%s458 + $0x58] sm:$0xff]
    %v471 = vld [vmem:[%s458 + $0x60] sm:$0xff]
    %v472 = vld [vmem:[%s458 + $0x68] sm:$0xff]
    %v473 = vld [vmem:[%s458 + $0x70] sm:$0xff]
    %v474 = vld [vmem:[%s458 + $0x78] sm:$0xff]
    %v491 = vunpack.c.l.b16 %v459
    %v492 = vunpack.c.h.b16 %v459
    %v493 = vunpack.c.l.b16 %v460
    %v494 = vunpack.c.h.b16 %v460
    %v495 = vunpack.c.l.b16 %v461
    %v496 = vunpack.c.h.b16 %v461
    %v497 = vunpack.c.l.b16 %v462
    %v498 = vunpack.c.h.b16 %v462
    %v499 = vunpack.c.l.b16 %v463
    %v500 = vunpack.c.h.b16 %v463
    %v501 = vunpack.c.l.b16 %v464
    %v502 = vunpack.c.h.b16 %v464
    %v503 = vunpack.c.l.b16 %v465
    %v504 = vunpack.c.h.b16 %v465
    %v505 = vunpack.c.l.b16 %v466
    %v506 = vunpack.c.h.b16 %v466
    %v507 = vunpack.c.l.b16 %v467
    %v508 = vunpack.c.h.b16 %v467
    %v509 = vunpack.c.l.b16 %v468
    %v510 = vunpack.c.h.b16 %v468
    %v511 = vunpack.c.l.b16 %v469
    %v512 = vunpack.c.h.b16 %v469
    %v513 = vunpack.c.l.b16 %v470
    %v514 = vunpack.c.h.b16 %v470
    %v515 = vunpack.c.l.b16 %v471
    %v516 = vunpack.c.h.b16 %v471
    %v517 = vunpack.c.l.b16 %v472
    %v518 = vunpack.c.h.b16 %v472
    %v519 = vunpack.c.l.b16 %v473
    %v520 = vunpack.c.h.b16 %v473
    %v521 = vunpack.c.l.b16 %v474
    %v522 = vunpack.c.h.b16 %v474
    %v523 = vpack.c.b16 %v495, %v491
    %v524 = vpack.c.b16 %v496, %v492
    %v525 = vpack.c.b16 %v497, %v493
    %v526 = vpack.c.b16 %v498, %v494
    %v527 = vpack.c.b16 %v503, %v499
    %v528 = vpack.c.b16 %v504, %v500
    %v529 = vpack.c.b16 %v505, %v501
    %v530 = vpack.c.b16 %v506, %v502
    %v531 = vpack.c.b16 %v511, %v507
    %v532 = vpack.c.b16 %v512, %v508
    %v533 = vpack.c.b16 %v513, %v509
    %v534 = vpack.c.b16 %v514, %v510
    %v535 = vpack.c.b16 %v519, %v515
    %v536 = vpack.c.b16 %v520, %v516
    %v537 = vpack.c.b16 %v521, %v517
    %v538 = vpack.c.b16 %v522, %v518
    %v556 = vsel %vm78, %v456, 0
    %v559 = vsel %vm78, %v457, 0
    %561 = vmatpush.bf16.msra.mxu0 0
    %562 = vmatpush.bf16.msra.mxu0 0
    %563 = vmatpush.bf16.msra.mxu0 0
    %564 = vmatpush.bf16.msra.mxu0 0
    %565 = vmatpush.bf16.msra.mxu0 %v535
    %566 = vmatpush.bf16.msra.mxu0 %v531
    %567 = vmatpush.bf16.msra.mxu0 %v527
    %568 = vmatpush.bf16.msra.mxu0 %v523
    %569 = vmatmul.bf16.gmra.mxu0 %v556
    %v570 = vpop.f32.mrf.mxu0
    %v571 = vadd.f32 0.0, %v570
    %v572 = vpop.f32.mrf.mxu0
    %v573 = vadd.f32 0.0, %v572
    %574 = vmatmul.bf16.gmra.mxu0 %v559
    %v575 = vpop.f32.mrf.mxu0
    %v576 = vadd.f32 0.0, %v575
    %v577 = vpop.f32.mrf.mxu0
    %v578 = vadd.f32 0.0, %v577
    %579 = vdwg.mxu0
    %580 = vmatpush.bf16.msra.mxu0 0
    %581 = vmatpush.bf16.msra.mxu0 0
    %582 = vmatpush.bf16.msra.mxu0 0
    %583 = vmatpush.bf16.msra.mxu0 0
    %584 = vmatpush.bf16.msra.mxu0 %v536
    %585 = vmatpush.bf16.msra.mxu0 %v532
    %586 = vmatpush.bf16.msra.mxu0 %v528
    %587 = vmatpush.bf16.msra.mxu0 %v524
    %588 = vmatmul.bf16.gmra.mxu0 %v556
    %v589 = vpop.f32.mrf.mxu0
    %v590 = vadd.f32 0.0, %v589
    %v591 = vpop.f32.mrf.mxu0
    %v592 = vadd.f32 0.0, %v591
    %593 = vmatmul.bf16.gmra.mxu0 %v559
    %v594 = vpop.f32.mrf.mxu0
    %v595 = vadd.f32 0.0, %v594
    %v596 = vpop.f32.mrf.mxu0
    %v597 = vadd.f32 0.0, %v596
    %598 = vdwg.mxu0
    %599 = vmatpush.bf16.msra.mxu0 0
    %600 = vmatpush.bf16.msra.mxu0 0
    %601 = vmatpush.bf16.msra.mxu0 0
    %602 = vmatpush.bf16.msra.mxu0 0
    %603 = vmatpush.bf16.msra.mxu0 %v537
    %604 = vmatpush.bf16.msra.mxu0 %v533
    %605 = vmatpush.bf16.msra.mxu0 %v529
    %606 = vmatpush.bf16.msra.mxu0 %v525
    %607 = vmatmul.bf16.gmra.mxu0 %v556
    %v608 = vpop.f32.mrf.mxu0
    %v609 = vadd.f32 0.0, %v608
    %v610 = vpop.f32.mrf.mxu0
    %v611 = vadd.f32 0.0, %v610
    %612 = vmatmul.bf16.gmra.mxu0 %v559
    %v613 = vpop.f32.mrf.mxu0
    %v614 = vadd.f32 0.0, %v613
    %v615 = vpop.f32.mrf.mxu0
    %v616 = vadd.f32 0.0, %v615
    %617 = vdwg.mxu0
    %618 = vmatpush.bf16.msra.mxu0 0
    %619 = vmatpush.bf16.msra.mxu0 0
    %620 = vmatpush.bf16.msra.mxu0 0
    %621 = vmatpush.bf16.msra.mxu0 0
    %622 = vmatpush.bf16.msra.mxu0 %v538
    %623 = vmatpush.bf16.msra.mxu0 %v534
    %624 = vmatpush.bf16.msra.mxu0 %v530
    %625 = vmatpush.bf16.msra.mxu0 %v526
    %626 = vmatmul.bf16.gmra.mxu0 %v556
    %v627 = vpop.f32.mrf.mxu0
    %v628 = vadd.f32 0.0, %v627
    %v629 = vpop.f32.mrf.mxu0
    %v630 = vadd.f32 0.0, %v629
    %631 = vmatmul.bf16.gmra.mxu0 %v559
    %v632 = vpop.f32.mrf.mxu0
    %v633 = vadd.f32 0.0, %v632
    %v634 = vpop.f32.mrf.mxu0
    %v635 = vadd.f32 0.0, %v634
    %636 = vdwg.mxu0
    %v637 = vadd.f32 %v386, %v571
    %v638 = vadd.f32 %v405, %v590
    %v639 = vadd.f32 %v424, %v609
    %v640 = vadd.f32 %v443, %v628
    %v641 = vadd.f32 %v388, %v573
    %v642 = vadd.f32 %v407, %v592
    %v643 = vadd.f32 %v426, %v611
    %v644 = vadd.f32 %v445, %v630
    %v645 = vadd.f32 %v391, %v576
    %v646 = vadd.f32 %v410, %v595
    %v647 = vadd.f32 %v429, %v614
    %v648 = vadd.f32 %v448, %v633
    %v649 = vadd.f32 %v393, %v578
    %v650 = vadd.f32 %v412, %v597
    %v651 = vadd.f32 %v431, %v616
    %v652 = vadd.f32 %v450, %v635
    %v653 = vld [vmem:[#allocation9] sm:$0xf]
    %v655 = vperm.slane %v653, 0
    %v656 = vperm.slane %v653, 1
    %v657 = vperm.slane %v653, 2
    %v658 = vperm.slane %v653, 3
    %v663 = vadd.f32 %v637, %v655
    %v664 = vadd.f32 %v638, %v656
    %v665 = vadd.f32 %v639, %v657
    %v666 = vadd.f32 %v640, %v658
    %v667 = vadd.f32 %v641, %v655
    %v668 = vadd.f32 %v642, %v656
    %v669 = vadd.f32 %v643, %v657
    %v670 = vadd.f32 %v644, %v658
    %v671 = vadd.f32 %v645, %v655
    %v672 = vadd.f32 %v646, %v656
    %v673 = vadd.f32 %v647, %v657
    %v674 = vadd.f32 %v648, %v658
    %v675 = vadd.f32 %v649, %v655
    %v676 = vadd.f32 %v650, %v656
    %v677 = vadd.f32 %v651, %v657
    %v678 = vadd.f32 %v652, %v658
    %s679 = sld [smem:[#allocation3]]
    %vm680 = vcmp.ge.f32.partialorder %v663, 0.0
    %vm681 = vcmp.ge.f32.partialorder %v664, 0.0
    %vm682 = vcmp.ge.f32.partialorder %v665, 0.0
    %vm683 = vcmp.ge.f32.partialorder %v666, 0.0
    %vm684 = vcmp.ge.f32.partialorder %v667, 0.0
    %vm685 = vcmp.ge.f32.partialorder %v668, 0.0
    %vm686 = vcmp.ge.f32.partialorder %v669, 0.0
    %vm687 = vcmp.ge.f32.partialorder %v670, 0.0
    %vm688 = vcmp.ge.f32.partialorder %v671, 0.0
    %vm689 = vcmp.ge.f32.partialorder %v672, 0.0
    %vm690 = vcmp.ge.f32.partialorder %v673, 0.0
    %vm691 = vcmp.ge.f32.partialorder %v674, 0.0
    %vm692 = vcmp.ge.f32.partialorder %v675, 0.0
    %vm693 = vcmp.ge.f32.partialorder %v676, 0.0
    %vm694 = vcmp.ge.f32.partialorder %v677, 0.0
    %vm695 = vcmp.ge.f32.partialorder %v678, 0.0
    %v696 = vstv %s679
    %v697 = vmul.f32 %v696, %v663
    %v698 = vmul.f32 %v696, %v664
    %v699 = vmul.f32 %v696, %v665
    %v700 = vmul.f32 %v696, %v666
    %v701 = vmul.f32 %v696, %v667
    %v702 = vmul.f32 %v696, %v668
    %v703 = vmul.f32 %v696, %v669
    %v704 = vmul.f32 %v696, %v670
    %v705 = vmul.f32 %v696, %v671
    %v706 = vmul.f32 %v696, %v672
    %v707 = vmul.f32 %v696, %v673
    %v708 = vmul.f32 %v696, %v674
    %v709 = vmul.f32 %v696, %v675
    %v710 = vmul.f32 %v696, %v676
    %v711 = vmul.f32 %v696, %v677
    %v712 = vmul.f32 %v696, %v678
    %v713 = vsel %vm680, %v663, %v697
    %v714 = vsel %vm681, %v664, %v698
    %v715 = vsel %vm682, %v665, %v699
    %v716 = vsel %vm683, %v666, %v700
    %v717 = vsel %vm684, %v667, %v701
    %v718 = vsel %vm685, %v668, %v702
    %v719 = vsel %vm686, %v669, %v703
    %v720 = vsel %vm687, %v670, %v704
    %v721 = vsel %vm688, %v671, %v705
    %v722 = vsel %vm689, %v672, %v706
    %v723 = vsel %vm690, %v673, %v707
    %v724 = vsel %vm691, %v674, %v708
    %v725 = vsel %vm692, %v675, %v709
    %v726 = vsel %vm693, %v676, %v710
    %v727 = vsel %vm694, %v677, %v711
    %v728 = vsel %vm695, %v678, %v712
    %729 = vst [vmem:[#allocation10] sm:$0xff] %v713
    %730 = vst [vmem:[#allocation10 + $0x8] sm:$0xff] %v714
    %731 = vst [vmem:[#allocation10 + $0x10] sm:$0xff] %v715
    %732 = vst [vmem:[#allocation10 + $0x18] sm:$0xff] %v716
    %733 = vst [vmem:[#allocation10 + $0x20] sm:$0xff] %v717
    %734 = vst [vmem:[#allocation10 + $0x28] sm:$0xff] %v718
    %735 = vst [vmem:[#allocation10 + $0x30] sm:$0xff] %v719
    %736 = vst [vmem:[#allocation10 + $0x38] sm:$0xff] %v720
    %737 = vst [vmem:[#allocation10 + $0x40] sm:$0xff] %v721
    %738 = vst [vmem:[#allocation10 + $0x48] sm:$0xff] %v722
    %739 = vst [vmem:[#allocation10 + $0x50] sm:$0xff] %v723
    %740 = vst [vmem:[#allocation10 + $0x58] sm:$0xff] %v724
    %741 = vst [vmem:[#allocation10 + $0x60] sm:$0xff] %v725
    %742 = vst [vmem:[#allocation10 + $0x68] sm:$0xff] %v726
    %743 = vst [vmem:[#allocation10 + $0x70] sm:$0xff] %v727
    %744 = vst [vmem:[#allocation10 + $0x78] sm:$0xff] %v728
    // Predicated region
    $region30: #{tpu_custom_call.1} parent=1 // pred_check
      _
    $region31: #{tpu_custom_call.1} parent=1 // pred_check_branch
      %746 = sbr.rel (0) target = $region33
    $region32: #{tpu_custom_call.1} parent=1 // pred_region
      %748 = vsyncadd [#allocation6], 0
      %s749 = sshll.u32 [#allocation10], 4
      %s750 = int_to_ptr.vmem [resolvable:$true] %s749
      %s751 = sshll.u32 %s4, 4
      %s752 = int_to_ptr.hbm [resolvable:$true] %s751
      %757 = dma.vmem_to_hbm [thread:$0]  %s750, 2048, %s752, [#allocation6], 512, 512, 32
    $region33: #{tpu_custom_call.1} parent=1 // pred_fallthru
      _
    // Predicated region
    $region34: #{tpu_custom_call.1} parent=1 // pred_check
      _
    $region35: #{tpu_custom_call.1} parent=1 // pred_check_branch
      %759 = sbr.rel (0) target = $region37
    $region36: #{tpu_custom_call.1} parent=1 // pred_region
      %761 = dma.done [#allocation6], 2048
    $region37: #{tpu_custom_call.1} parent=1 // pred_fallthru
      _
    %762 = vsyncpa [#allocation5], 1
    %763 = vsyncpa [#allocation8], 1
    %764 = vsyncpa [#allocation6], 1

</llo_original>
